<compile_context>
chip_gen: v6e
topology: v6e:2x2x1
jax: 0.10.0
libtpu: 0.0.40
codegen_flags: <defaults>
</compile_context>

<pallas_src>
import math

import jax
import jax.numpy as jnp
from jax.experimental import pallas as pl
from jax.experimental.pallas import tpu as pltpu


def _copy_kernel(x_ref, o_ref):
    # Pure lane-dense copy of one (tile_rows, lanes) block.
    o_ref[...] = x_ref[...]


def _pick_slab_layout(total: int):
    """Row-major (rows, lanes) factorization that is lane-dense (lanes % 128 == 0),
    preferring layouts with rows >= 8 so blocks are also sublane-dense."""
    best_any = None
    for lanes in (2048, 1024, 512, 256, 128):
        if total % lanes != 0:
            continue
        rows = total // lanes
        if best_any is None:
            best_any = (rows, lanes)
        if rows >= 8:
            return rows, lanes
    return best_any  # None if total is not a multiple of 128


def flatten_layer(x: jax.Array, *, materialize: bool = True) -> jax.Array:
    """Pallas equivalent of FlattenLayer.forward: (N, ...) -> (N, prod(...)).

    materialize=False returns the pure metadata reshape (the recommended
    zero-HBM-traffic path). materialize=True runs the tiled Pallas copy.
    """
    n = x.shape[0]
    d = int(math.prod(x.shape[1:]))

    # The actual flatten: a row-major, metadata-only reshape.
    x_flat = jnp.reshape(x, (n, d))

    if not materialize:
        return x_flat

    total = n * d
    layout = _pick_slab_layout(total)
    if layout is None:
        # No 128-aligned slab layout exists; flatten is metadata-only anyway.
        return x_flat

    rows, lanes = layout
    # Still a row-major view of the same bytes -> bit-identical ordering.
    slab = jnp.reshape(x_flat, (rows, lanes))

    itemsize = jnp.dtype(x.dtype).itemsize
    # Minimum sublane multiple per dtype width (f32:8, bf16:16, int8/fp8:32).
    sub = {4: 8, 2: 16, 1: 32}.get(itemsize, 8)

    if rows <= sub:
        tile_rows = rows  # full-extent second-to-last dim is always legal
    else:
        # Cap per-tile footprint at ~4 MiB: with input+output double-buffered
        # that is <= ~16 MiB in flight, safe even on v7x's smaller VMEM.
        target_tile_bytes = 4 * 1024 * 1024
        tile_rows = (target_tile_bytes // (lanes * itemsize)) // sub * sub
        tile_rows = int(max(sub, min(tile_rows, (rows // sub) * sub)))

    grid = (pl.cdiv(rows, tile_rows),)

    out = pl.pallas_call(
        _copy_kernel,
        out_shape=jax.ShapeDtypeStruct((rows, lanes), x.dtype),
        grid=grid,
        in_specs=[pl.BlockSpec((tile_rows, lanes), lambda i: (i, 0))],
        out_specs=pl.BlockSpec((tile_rows, lanes), lambda i: (i, 0)),
        input_output_aliases={0: 0},  # identity copy -> in-place is free
        compiler_params=pltpu.CompilerParams(
            dimension_semantics=("parallel",),  # independent tiles (megacore)
            vmem_limit_bytes=64 * 1024 * 1024,
        ),
    )(slab)

    return jnp.reshape(out, (n, d))


if __name__ == "__main__":
    key = jax.random.PRNGKey(0)
    # Small NCHW input consistent with how FlattenLayer is used (after convs).
    N, C, H, W = 2, 4, 16, 16
    x = jax.random.normal(key, (N, C, H, W), dtype=jnp.float32)

    y = flatten_layer(x)
    y = jax.block_until_ready(y)

    # Reference: exact semantics of X.view(X.shape[0], -1).
    y_ref = jnp.reshape(x, (N, C * H * W))

    assert y.shape == (N, C * H * W), y.shape
    assert y.dtype == x.dtype, y.dtype
    assert bool(jnp.array_equal(y, y_ref)), "mismatch vs reference flatten"

    # Also exercise the zero-cost metadata-only path recommended by the review.
    y_view = jax.block_until_ready(flatten_layer(x, materialize=False))
    assert bool(jnp.array_equal(y_view, y_ref)), "mismatch vs reference (view path)"

    print("KERNEL_OK")
</pallas_src>

<mosaic_0001>
module attributes {stable_mosaic.version = 11 : i64} {
  func.func @_copy_kernel(%arg0: i32, %arg1: memref<8x256xf32, #tpu.memory_space<vmem>>, %arg2: memref<8x256xf32, #tpu.memory_space<vmem>>) attributes {dimension_semantics = [#tpu.dimension_semantics<parallel>], iteration_bounds = array<i64: 1>, scalar_prefetch = 0 : i64, scratch_operands = 0 : i64, tpu.core_type = #tpu.core_type<tc>, window_params = [{transform_indices = @transform_0, window_bounds = array<i64: 8, 256>}, {transform_indices = @transform_1, window_bounds = array<i64: 8, 256>}]} {
    %c0 = arith.constant 0 : index
    %c0_0 = arith.constant 0 : index
    %0 = vector.load %arg1[%c0, %c0_0] : memref<8x256xf32, #tpu.memory_space<vmem>>, vector<8x256xf32>
    %c0_1 = arith.constant 0 : index
    %c0_2 = arith.constant 0 : index
    %1 = vector.load %arg2[%c0_1, %c0_2] : memref<8x256xf32, #tpu.memory_space<vmem>>, vector<8x256xf32>
    tpu.vector_store %arg2[%c0_1, %c0_2], %0 {strides = array<i32>} : memref<8x256xf32, #tpu.memory_space<vmem>>, vector<8x256xf32>,
    return
  }
  func.func @transform_0(%arg0: i32) -> (i32, i32) {
    %c0_i32 = arith.constant 0 : i32
    %c0_i32_0 = arith.constant 0 : i32
    return %arg0, %c0_i32 : i32, i32
  }
  func.func @transform_1(%arg0: i32) -> (i32, i32) {
    %c0_i32 = arith.constant 0 : i32
    %c0_i32_0 = arith.constant 0 : i32
    return %arg0, %c0_i32 : i32, i32
  }
}

</mosaic_0001>

<llo_original>
// kernel: tpu_custom_call.1
$region0: #{tpu_custom_call.1}
  #allocation0 [shape = 'u32[]', space=smem, size = 0x4, offset = 0x4, fixed_abs, tag = 'smem constant byte address 0x4 - core index']
  #allocation1 [shape = 'u32[144,128]{1,0:T(1,128)}', space=vmem, size = 0x12000, scoped, tag = 'internal scratch']
  %s0 = inlined_call_operand.hbm [shape: f32[8,256], index: 0, kind: input, shape index: {}, may-alias: {0,1}]
  %s1 = inlined_call_operand.hbm [shape: f32[8,256], index: 1, kind: output, shape index: {}, may-alias: {0,1}]
  %s2 = sld [smem:[#allocation0]]
  $region18: #{tpu_custom_call.1} parent=0
    _
  %s4 = ssub.s32 1, %s2
  %s5 = scalar_select 0, %s4, %s2
  $region1: #{tpu_custom_call.1} parent=0
    #allocation2 [shape = 'u8[8192]{0}', space=vmem, size = 0x2000, scoped, tag = 'input window, operand 0, single buffered']
    #allocation3 [shape = 's32[1]{0}', space=sflag, size = 0x4, scoped, tag = 'scoped memory for tpu_custom_call.1']
    #allocation4 [shape = 's32[1]{0}', space=sflag, size = 0x4, scoped, tag = 'scoped memory for tpu_custom_call.1']
    #allocation5 [shape = 'u8[8192]{0}', space=vmem, size = 0x2000, scoped, tag = 'output window, operand 0, single buffered']
    %6 = vsyncpa [#allocation3], 0
    %7 = vsyncpa [#allocation4], 0
    // Predicated region
    $region2: #{tpu_custom_call.1} parent=1 // pred_check
      _
    $region3: #{tpu_custom_call.1} parent=1 // pred_check_branch
      %9 = sbr.rel (0) target = $region5
    $region4: #{tpu_custom_call.1} parent=1 // pred_region
      %s11 = ssub.s32 256, 256
      %12 = vsyncadd [#allocation3], %s11
      %s14 = sshll.u32 [#allocation2], 4
      %s15 = int_to_ptr.vmem [resolvable:$true] %s14
      %17 = dma.hbm_to_vmem [thread:$0]  %s0, 256, %s15, [#allocation3]
    $region5: #{tpu_custom_call.1} parent=1 // pred_fallthru
      _
    // Predicated region
    $region6: #{tpu_custom_call.1} parent=1 // pred_check
      _
    $region7: #{tpu_custom_call.1} parent=1 // pred_check_branch
      %19 = sbr.rel (0) target = $region9
    $region8: #{tpu_custom_call.1} parent=1 // pred_region
      %20 = dma.done [#allocation3], 256
    $region9: #{tpu_custom_call.1} parent=1 // pred_fallthru
      _
    %v21 = vld [vmem:[#allocation2] sm:$0xff]
    %v22 = vld [vmem:[#allocation2 + $0x8] sm:$0xff]
    %23 = vst [vmem:[#allocation5] sm:$0xff] %v21
    %24 = vst [vmem:[#allocation5 + $0x8] sm:$0xff] %v22
    // Predicated region
    $region10: #{tpu_custom_call.1} parent=1 // pred_check
      _
    $region11: #{tpu_custom_call.1} parent=1 // pred_check_branch
      %26 = sbr.rel (0) target = $region13
    $region12: #{tpu_custom_call.1} parent=1 // pred_region
      %s28 = ssub.s32 256, 256
      %29 = vsyncadd [#allocation4], %s28
      %s31 = sshll.u32 [#allocation5], 4
      %s32 = int_to_ptr.vmem [resolvable:$true] %s31
      %34 = dma.vmem_to_hbm [thread:$0]  %s32, 256, %s1, [#allocation4]
    $region13: #{tpu_custom_call.1} parent=1 // pred_fallthru
      _
    // Predicated region
    $region14: #{tpu_custom_call.1} parent=1 // pred_check
      _
    $region15: #{tpu_custom_call.1} parent=1 // pred_check_branch
      %36 = sbr.rel (0) target = $region17
    $region16: #{tpu_custom_call.1} parent=1 // pred_region
      %37 = dma.done [#allocation4], 256
    $region17: #{tpu_custom_call.1} parent=1 // pred_fallthru
      _
    %38 = vsyncpa [#allocation3], 1
    %39 = vsyncpa [#allocation4], 1

</llo_original>
